<compile_context>
chip_gen: v6e
topology: v6e:2x2x1
jax: 0.10.0
libtpu: 0.0.40
codegen_flags: <defaults>
</compile_context>

<pallas_src>
import functools

import jax
import jax.numpy as jnp
from jax import lax
from jax.experimental import pallas as pl
from jax.experimental.pallas import tpu as pltpu


# --------------------------------------------------------------------------
# Pallas kernel: one batch element per grid step (all slabs lane-dense).
#   x_ref    : (H+K-1, (W+K-1)*Cin)  zero-padded input slab (NHWC, W&C flattened)
#   w_ref    : (K*K,  W*Cin)         folded depthwise weights, pre-tiled along W
#   beta_ref : (1,    W*Cin)         folded per-channel bias,  pre-tiled along W
#   wp_ref   : (W*Cin, W*Cout)       block-diagonal 1x1 projection (BN scale folded)
#   pb_ref   : (1,    W*Cout)        projection BN shift, pre-tiled along W
#   o_ref    : (H,    W*Cout)
# --------------------------------------------------------------------------
def rep_move_kernel(x_ref, w_ref, beta_ref, wp_ref, pb_ref, o_ref, *, K, Cin):
    H = o_ref.shape[0]
    WCin = w_ref.shape[1]

    x = x_ref[...].astype(jnp.float32)           # (H+K-1, (W+K-1)*Cin)
    w = w_ref[...].astype(jnp.float32)           # (K*K, W*Cin)

    # Hoisted kx lane-shifts: K lane slices done once, outside the ky loop.
    xs = [x[:, kx * Cin: kx * Cin + WCin] for kx in range(K)]   # each (H+K-1, W*Cin)

    # Single folded depthwise KxK + bias, accumulated in f32 on the VPU.
    acc = jnp.broadcast_to(beta_ref[...].astype(jnp.float32), (H, WCin))
    for ky in range(K):                          # static unroll: K*K = 9 taps
        for kx in range(K):
            tap = ky * K + kx
            acc = acc + xs[kx][ky:ky + H, :] * w[tap:tap + 1, :]

    moe = acc * jax.nn.sigmoid(acc)              # SiLU (exp + recip on the EUP)

    # 1x1 projection as ONE MXU matmul against the block-diagonal weight:
    # (H, W*Cin) @ (W*Cin, W*Cout) -> (H, W*Cout), already lane-dense for the store.
    y = jnp.dot(moe.astype(wp_ref.dtype), wp_ref[...],
                preferred_element_type=jnp.float32)
    y = y + pb_ref[...].astype(jnp.float32)
    y = y * jax.nn.sigmoid(y)                    # SiLU

    o_ref[...] = y.astype(o_ref.dtype)


# --------------------------------------------------------------------------
# Wrapper: NCHW in / NCHW out (PyTorch layout); all parameter folding is glue.
# --------------------------------------------------------------------------
def rep_move_forward(x_nchw, params, *, compute_dtype=jnp.float32):
    """compute_dtype=jnp.bfloat16 halves HBM/DMA traffic on v6e/v7x (accumulation
    stays f32 in-kernel); keep f32 on v5e (no bf16 VALU) or when bit-accuracy
    against the f32 reference matters."""
    B, Cin, H, W = x_nchw.shape
    K = params["expert_w"].shape[-1]
    Cout = params["prj_w"].shape[0]
    eps = params["eps"]
    pad = K // 2
    Hp, Wp = H + 2 * pad, W + 2 * pad

    # ---- fold experts: eval-mode BN + learnable scales -> ONE depthwise kernel
    std = jnp.sqrt(params["expert_var"] + eps)                          # (E, Cin)
    alpha = params["scales"] * params["expert_gamma"] / std             # (E, Cin)
    we = params["expert_w"][:, :, 0, :, :]                              # (E, Cin, K, K)
    w_eff = jnp.einsum("ec,eckl->klc", alpha, we)                       # (K, K, Cin)
    beta = jnp.sum(
        params["scales"]
        * (params["expert_beta"]
           - params["expert_mean"] * params["expert_gamma"] / std),
        axis=0)                                                         # (Cin,)

    # lane-dense (tiled along W) versions for the kernel
    w_tiled = jnp.tile(w_eff.reshape(K * K, Cin), (1, W))               # (K*K, W*Cin)
    beta_t = jnp.tile(beta.reshape(1, Cin), (1, W))                     # (1,   W*Cin)

    # ---- 1x1 projection: fold its BN scale into the weight; build the
    # block-diagonal (W*Cin, W*Cout) form so the MXU matmul consumes/produces
    # the lane-dense layout directly (K=W*Cin, N=W*Cout instead of 8x16).
    stdp = jnp.sqrt(params["prj_var"] + eps)                            # (Cout,)
    wp = params["prj_w"][:, :, 0, 0].T * (params["prj_gamma"] / stdp)[None, :]  # (Cin, Cout)
    pb = params["prj_beta"] - params["prj_mean"] * params["prj_gamma"] / stdp   # (Cout,)
    wp_blk = jnp.kron(jnp.eye(W, dtype=wp.dtype), wp)                   # (W*Cin, W*Cout)
    pb_t = jnp.tile(pb.reshape(1, Cout), (1, W))                        # (1, W*Cout)

    # ---- data layout: NCHW -> NHWC, zero pad, flatten (W, C) onto the lanes.
    # TODO(synk): keep NHWC end-to-end in the surrounding model to drop these
    # boundary transposes (this op is memory-bound; XLA fuses transpose+pad+
    # reshape into a single copy, but it still costs one HBM round trip).
    x = jnp.transpose(x_nchw, (0, 2, 3, 1))                             # (B, H, W, Cin)
    x = jnp.pad(x, ((0, 0), (pad, pad), (pad, pad), (0, 0)))
    x = x.reshape(B, Hp, Wp * Cin)

    x = x.astype(compute_dtype)
    w_tiled = w_tiled.astype(compute_dtype)
    beta_t = beta_t.astype(compute_dtype)
    wp_blk = wp_blk.astype(compute_dtype)
    pb_t = pb_t.astype(compute_dtype)

    kernel = functools.partial(rep_move_kernel, K=K, Cin=Cin)

    out = pl.pallas_call(
        kernel,
        out_shape=jax.ShapeDtypeStruct((B, H, W * Cout), x_nchw.dtype),
        grid=(B,),
        in_specs=[
            pl.BlockSpec((None, Hp, Wp * Cin), lambda b: (b, 0, 0)),
            pl.BlockSpec((K * K, W * Cin), lambda b: (0, 0)),
            pl.BlockSpec((1, W * Cin), lambda b: (0, 0)),
            pl.BlockSpec((W * Cin, W * Cout), lambda b: (0, 0)),
            pl.BlockSpec((1, W * Cout), lambda b: (0, 0)),
        ],
        out_specs=pl.BlockSpec((None, H, W * Cout), lambda b: (b, 0, 0)),
        compiler_params=pltpu.CompilerParams(
            dimension_semantics=("parallel",)),
    )(x, w_tiled, beta_t, wp_blk, pb_t)

    # (B, H, W*Cout) -> (B, H, W, Cout) -> NCHW
    return jnp.transpose(out.reshape(B, H, W, Cout), (0, 3, 1, 2))


# --------------------------------------------------------------------------
# Pure-JAX reference (mirrors the PyTorch forward, NCHW, unfused, eval-mode BN)
# --------------------------------------------------------------------------
def rep_move_reference(x, params):
    B, Cin, H, W = x.shape
    E, K = params["expert_w"].shape[0], params["expert_w"].shape[-1]
    eps = params["eps"]
    pad = K // 2
    dn = ("NCHW", "OIHW", "NCHW")

    moe = jnp.zeros((B, Cin, H, W), jnp.float32)
    for e in range(E):
        y = lax.conv_general_dilated(
            x, params["expert_w"][e], (1, 1), [(pad, pad), (pad, pad)],
            dimension_numbers=dn, feature_group_count=Cin)
        g = params["expert_gamma"][e][None, :, None, None]
        bb = params["expert_beta"][e][None, :, None, None]
        m = params["expert_mean"][e][None, :, None, None]
        v = params["expert_var"][e][None, :, None, None]
        y = (y - m) / jnp.sqrt(v + eps) * g + bb
        moe = moe + y * params["scales"][e][None, :, None, None]
    moe = moe * jax.nn.sigmoid(moe)

    y = lax.conv_general_dilated(moe, params["prj_w"], (1, 1), [(0, 0), (0, 0)],
                                 dimension_numbers=dn)
    g = params["prj_gamma"][None, :, None, None]
    bb = params["prj_beta"][None, :, None, None]
    m = params["prj_mean"][None, :, None, None]
    v = params["prj_var"][None, :, None, None]
    y = (y - m) / jnp.sqrt(v + eps) * g + bb
    return y * jax.nn.sigmoid(y)


# --------------------------------------------------------------------------
def make_params(key, in_channels, out_channels, num_experts, kernel_size):
    ks = jax.random.split(key, 12)
    E, Cin, Cout, K = num_experts, in_channels, out_channels, kernel_size
    params = {
        "eps": 1e-5,
        # experts: depthwise conv weights (E, Cin, 1, K, K)
        "expert_w": 0.1 * jax.random.normal(ks[0], (E, Cin, 1, K, K), jnp.float32),
        "expert_gamma": 0.5 + jax.random.uniform(ks[1], (E, Cin), jnp.float32),
        "expert_beta": 0.1 * jax.random.normal(ks[2], (E, Cin), jnp.float32),
        "expert_mean": 0.1 * jax.random.normal(ks[3], (E, Cin), jnp.float32),
        "expert_var": 0.5 + jax.random.uniform(ks[4], (E, Cin), jnp.float32),
        # scales init matches PyTorch: ones * 0.1
        "scales": 0.1 * jnp.ones((E, Cin), jnp.float32),
        # out_prj: 1x1 conv (Cout, Cin, 1, 1) + BN
        "prj_w": 0.2 * jax.random.normal(ks[5], (Cout, Cin, 1, 1), jnp.float32),
        "prj_gamma": 0.5 + jax.random.uniform(ks[6], (Cout,), jnp.float32),
        "prj_beta": 0.1 * jax.random.normal(ks[7], (Cout,), jnp.float32),
        "prj_mean": 0.1 * jax.random.normal(ks[8], (Cout,), jnp.float32),
        "prj_var": 0.5 + jax.random.uniform(ks[9], (Cout,), jnp.float32),
    }
    return params


if __name__ == "__main__":
    B, Cin, H, W = 2, 8, 16, 16
    Cout, E, K = 16, 9, 3

    key = jax.random.PRNGKey(0)
    kx, kp = jax.random.split(key)
    x = jax.random.normal(kx, (B, Cin, H, W), jnp.float32)   # NCHW, like PyTorch
    params = make_params(kp, Cin, Cout, E, K)

    out = jax.block_until_ready(rep_move_forward(x, params))
    ref = jax.block_until_ready(rep_move_reference(x, params))

    assert out.shape == (B, Cout, H, W), out.shape
    err = float(jnp.max(jnp.abs(out - ref)))
    assert jnp.allclose(out, ref, rtol=1e-3, atol=2e-4), err
    print("KERNEL_OK")
</pallas_src>

<mosaic_0001>
module attributes {stable_mosaic.version = 11 : i64} {
  func.func @rep_move_kernel(%arg0: i32, %arg1: memref<1x18x144xf32, #tpu.memory_space<vmem>>, %arg2: memref<9x128xf32, #tpu.memory_space<vmem>>, %arg3: memref<1x128xf32, #tpu.memory_space<vmem>>, %arg4: memref<128x256xf32, #tpu.memory_space<vmem>>, %arg5: memref<1x256xf32, #tpu.memory_space<vmem>>, %arg6: memref<1x16x256xf32, #tpu.memory_space<vmem>>) attributes {dimension_semantics = [#tpu.dimension_semantics<parallel>], iteration_bounds = array<i64: 2>, scalar_prefetch = 0 : i64, scratch_operands = 0 : i64, tpu.core_type = #tpu.core_type<tc>, window_params = [{transform_indices = @transform_0, window_bounds = array<i64: 1, 18, 144>}, {pipeline_mode = #tpu.pipeline_mode<synchronous>, transform_indices = @transform_1, window_bounds = array<i64: 9, 128>}, {pipeline_mode = #tpu.pipeline_mode<synchronous>, transform_indices = @transform_2, window_bounds = array<i64: 1, 128>}, {pipeline_mode = #tpu.pipeline_mode<synchronous>, transform_indices = @transform_3, window_bounds = array<i64: 128, 256>}, {pipeline_mode = #tpu.pipeline_mode<synchronous>, transform_indices = @transform_4, window_bounds = array<i64: 1, 256>}, {transform_indices = @transform_5, window_bounds = array<i64: 1, 16, 256>}]} {
    %c0 = arith.constant 0 : index
    %c0_0 = arith.constant 0 : index
    %c0_1 = arith.constant 0 : index
    %0 = vector.load %arg1[%c0, %c0_0, %c0_1] : memref<1x18x144xf32, #tpu.memory_space<vmem>>, vector<1x18x144xf32>
    %1 = vector.shape_cast %0 : vector<1x18x144xf32> to vector<18x144xf32>
    %c0_2 = arith.constant 0 : index
    %c0_3 = arith.constant 0 : index
    %2 = vector.load %arg2[%c0_2, %c0_3] : memref<9x128xf32, #tpu.memory_space<vmem>>, vector<9x128xf32>
    %3 = vector.extract_strided_slice %1 {offsets = [0, 0], sizes = [18, 128], strides = [1, 1]} : vector<18x144xf32> to vector<18x128xf32>
    %4 = vector.extract_strided_slice %1 {offsets = [0, 8], sizes = [18, 128], strides = [1, 1]} : vector<18x144xf32> to vector<18x128xf32>
    %5 = vector.extract_strided_slice %1 {offsets = [0, 16], sizes = [18, 128], strides = [1, 1]} : vector<18x144xf32> to vector<18x128xf32>
    %c0_4 = arith.constant 0 : index
    %c0_5 = arith.constant 0 : index
    %6 = vector.load %arg3[%c0_4, %c0_5] : memref<1x128xf32, #tpu.memory_space<vmem>>, vector<1x128xf32>
    %7 = vector.shape_cast %6 : vector<1x128xf32> to vector<1x128xf32>
    %8 = vector.broadcast %7 : vector<1x128xf32> to vector<16x128xf32>
    %9 = vector.extract_strided_slice %3 {offsets = [0, 0], sizes = [16, 128], strides = [1, 1]} : vector<18x128xf32> to vector<16x128xf32>
    %10 = vector.extract_strided_slice %2 {offsets = [0, 0], sizes = [1, 128], strides = [1, 1]} : vector<9x128xf32> to vector<1x128xf32>
    %11 = vector.broadcast %10 : vector<1x128xf32> to vector<16x128xf32>
    %12 = arith.mulf %9, %11 : vector<16x128xf32>
    %13 = arith.addf %8, %12 : vector<16x128xf32>
    %14 = vector.extract_strided_slice %4 {offsets = [0, 0], sizes = [16, 128], strides = [1, 1]} : vector<18x128xf32> to vector<16x128xf32>
    %15 = vector.extract_strided_slice %2 {offsets = [1, 0], sizes = [1, 128], strides = [1, 1]} : vector<9x128xf32> to vector<1x128xf32>
    %16 = vector.broadcast %15 : vector<1x128xf32> to vector<16x128xf32>
    %17 = arith.mulf %14, %16 : vector<16x128xf32>
    %18 = arith.addf %13, %17 : vector<16x128xf32>
    %19 = vector.extract_strided_slice %5 {offsets = [0, 0], sizes = [16, 128], strides = [1, 1]} : vector<18x128xf32> to vector<16x128xf32>
    %20 = vector.extract_strided_slice %2 {offsets = [2, 0], sizes = [1, 128], strides = [1, 1]} : vector<9x128xf32> to vector<1x128xf32>
    %21 = vector.broadcast %20 : vector<1x128xf32> to vector<16x128xf32>
    %22 = arith.mulf %19, %21 : vector<16x128xf32>
    %23 = arith.addf %18, %22 : vector<16x128xf32>
    %24 = vector.extract_strided_slice %3 {offsets = [1, 0], sizes = [16, 128], strides = [1, 1]} : vector<18x128xf32> to vector<16x128xf32>
    %25 = vector.extract_strided_slice %2 {offsets = [3, 0], sizes = [1, 128], strides = [1, 1]} : vector<9x128xf32> to vector<1x128xf32>
    %26 = vector.broadcast %25 : vector<1x128xf32> to vector<16x128xf32>
    %27 = arith.mulf %24, %26 : vector<16x128xf32>
    %28 = arith.addf %23, %27 : vector<16x128xf32>
    %29 = vector.extract_strided_slice %4 {offsets = [1, 0], sizes = [16, 128], strides = [1, 1]} : vector<18x128xf32> to vector<16x128xf32>
    %30 = vector.extract_strided_slice %2 {offsets = [4, 0], sizes = [1, 128], strides = [1, 1]} : vector<9x128xf32> to vector<1x128xf32>
    %31 = vector.broadcast %30 : vector<1x128xf32> to vector<16x128xf32>
    %32 = arith.mulf %29, %31 : vector<16x128xf32>
    %33 = arith.addf %28, %32 : vector<16x128xf32>
    %34 = vector.extract_strided_slice %5 {offsets = [1, 0], sizes = [16, 128], strides = [1, 1]} : vector<18x128xf32> to vector<16x128xf32>
    %35 = vector.extract_strided_slice %2 {offsets = [5, 0], sizes = [1, 128], strides = [1, 1]} : vector<9x128xf32> to vector<1x128xf32>
    %36 = vector.broadcast %35 : vector<1x128xf32> to vector<16x128xf32>
    %37 = arith.mulf %34, %36 : vector<16x128xf32>
    %38 = arith.addf %33, %37 : vector<16x128xf32>
    %39 = vector.extract_strided_slice %3 {offsets = [2, 0], sizes = [16, 128], strides = [1, 1]} : vector<18x128xf32> to vector<16x128xf32>
    %40 = vector.extract_strided_slice %2 {offsets = [6, 0], sizes = [1, 128], strides = [1, 1]} : vector<9x128xf32> to vector<1x128xf32>
    %41 = vector.broadcast %40 : vector<1x128xf32> to vector<16x128xf32>
    %42 = arith.mulf %39, %41 : vector<16x128xf32>
    %43 = arith.addf %38, %42 : vector<16x128xf32>
    %44 = vector.extract_strided_slice %4 {offsets = [2, 0], sizes = [16, 128], strides = [1, 1]} : vector<18x128xf32> to vector<16x128xf32>
    %45 = vector.extract_strided_slice %2 {offsets = [7, 0], sizes = [1, 128], strides = [1, 1]} : vector<9x128xf32> to vector<1x128xf32>
    %46 = vector.broadcast %45 : vector<1x128xf32> to vector<16x128xf32>
    %47 = arith.mulf %44, %46 : vector<16x128xf32>
    %48 = arith.addf %43, %47 : vector<16x128xf32>
    %49 = vector.extract_strided_slice %5 {offsets = [2, 0], sizes = [16, 128], strides = [1, 1]} : vector<18x128xf32> to vector<16x128xf32>
    %50 = vector.extract_strided_slice %2 {offsets = [8, 0], sizes = [1, 128], strides = [1, 1]} : vector<9x128xf32> to vector<1x128xf32>
    %51 = vector.broadcast %50 : vector<1x128xf32> to vector<16x128xf32>
    %52 = arith.mulf %49, %51 : vector<16x128xf32>
    %53 = arith.addf %48, %52 : vector<16x128xf32>
    %54 = arith.negf %53 : vector<16x128xf32>
    %55 = math.exp %54 : vector<16x128xf32>
    %cst = arith.constant 1.000000e+00 : f32
    %56 = vector.broadcast %cst : f32 to vector<16x128xf32>
    %57 = arith.addf %56, %55 : vector<16x128xf32>
    %58 = arith.divf %56, %57 : vector<16x128xf32>
    %59 = arith.mulf %53, %58 : vector<16x128xf32>
    %c0_6 = arith.constant 0 : index
    %c0_7 = arith.constant 0 : index
    %60 = vector.load %arg4[%c0_6, %c0_7] : memref<128x256xf32, #tpu.memory_space<vmem>>, vector<128x256xf32>
    %cst_8 = arith.constant dense<0.000000e+00> : vector<16x256xf32>
    %61 = tpu.matmul %59, %60, %cst_8 {dimension_numbers = #tpu.dot_dimension_numbers<[1], [0], [0], [1], [0, 0, 1, 1], [], []>} : vector<16x128xf32>, vector<128x256xf32>, vector<16x256xf32> -> vector<16x256xf32>
    %c0_9 = arith.constant 0 : index
    %c0_10 = arith.constant 0 : index
    %62 = vector.load %arg5[%c0_9, %c0_10] : memref<1x256xf32, #tpu.memory_space<vmem>>, vector<1x256xf32>
    %63 = vector.broadcast %62 : vector<1x256xf32> to vector<16x256xf32>
    %64 = arith.addf %61, %63 : vector<16x256xf32>
    %65 = arith.negf %64 : vector<16x256xf32>
    %66 = math.exp %65 : vector<16x256xf32>
    %cst_11 = arith.constant 1.000000e+00 : f32
    %67 = vector.broadcast %cst_11 : f32 to vector<16x256xf32>
    %68 = arith.addf %67, %66 : vector<16x256xf32>
    %69 = arith.divf %67, %68 : vector<16x256xf32>
    %70 = arith.mulf %64, %69 : vector<16x256xf32>
    %c0_12 = arith.constant 0 : index
    %c0_13 = arith.constant 0 : index
    %c0_14 = arith.constant 0 : index
    %71 = vector.load %arg6[%c0_12, %c0_13, %c0_14] : memref<1x16x256xf32, #tpu.memory_space<vmem>>, vector<1x16x256xf32>
    %72 = vector.shape_cast %71 : vector<1x16x256xf32> to vector<16x256xf32>
    %73 = vector.shape_cast %70 : vector<16x256xf32> to vector<1x16x256xf32>
    tpu.vector_store %arg6[%c0_12, %c0_13, %c0_14], %73 {strides = array<i32>} : memref<1x16x256xf32, #tpu.memory_space<vmem>>, vector<1x16x256xf32>,
    return
  }
  func.func @transform_0(%arg0: i32) -> (i32, i32, i32) {
    %c0_i32 = arith.constant 0 : i32
    %c0_i32_0 = arith.constant 0 : i32
    %c0_i32_1 = arith.constant 0 : i32
    return %arg0, %c0_i32, %c0_i32_0 : i32, i32, i32
  }
  func.func @transform_1(%arg0: i32) -> (i32, i32) {
    %c0_i32 = arith.constant 0 : i32
    %c0_i32_0 = arith.constant 0 : i32
    %c0_i32_1 = arith.constant 0 : i32
    return %c0_i32, %c0_i32_0 : i32, i32
  }
  func.func @transform_2(%arg0: i32) -> (i32, i32) {
    %c0_i32 = arith.constant 0 : i32
    %c0_i32_0 = arith.constant 0 : i32
    %c0_i32_1 = arith.constant 0 : i32
    return %c0_i32, %c0_i32_0 : i32, i32
  }
  func.func @transform_3(%arg0: i32) -> (i32, i32) {
    %c0_i32 = arith.constant 0 : i32
    %c0_i32_0 = arith.constant 0 : i32
    %c0_i32_1 = arith.constant 0 : i32
    return %c0_i32, %c0_i32_0 : i32, i32
  }
  func.func @transform_4(%arg0: i32) -> (i32, i32) {
    %c0_i32 = arith.constant 0 : i32
    %c0_i32_0 = arith.constant 0 : i32
    %c0_i32_1 = arith.constant 0 : i32
    return %c0_i32, %c0_i32_0 : i32, i32
  }
  func.func @transform_5(%arg0: i32) -> (i32, i32, i32) {
    %c0_i32 = arith.constant 0 : i32
    %c0_i32_0 = arith.constant 0 : i32
    %c0_i32_1 = arith.constant 0 : i32
    return %arg0, %c0_i32, %c0_i32_0 : i32, i32, i32
  }
}

</mosaic_0001>

<llo_original>
// kernel: tpu_custom_call.1
$region0: #{tpu_custom_call.1}
  #allocation0 [shape = 'u32[]', space=smem, size = 0x4, offset = 0x4, fixed_abs, tag = 'smem constant byte address 0x4 - core index']
  #allocation1 [shape = 'u32[144,128]{1,0:T(1,128)}', space=vmem, size = 0x12000, scoped, tag = 'internal scratch']
  %s0 = inlined_call_operand.vmem [shape: f32[2,18,144], index: 0, kind: input, shape index: {}]
  %s1 = inlined_call_operand.vmem [shape: f32[9,128], index: 1, kind: input, shape index: {}]
  %s2 = inlined_call_operand.vmem [shape: f32[1,128], index: 2, kind: input, shape index: {}]
  %s3 = inlined_call_operand.hbm [shape: f32[128,256], index: 3, kind: input, shape index: {}]
  %s4 = inlined_call_operand.vmem [shape: f32[1,256], index: 4, kind: input, shape index: {}]
  %s5 = inlined_call_operand.hbm [shape: f32[2,16,256], index: 5, kind: output, shape index: {}]
  %s6 = sld [smem:[#allocation0]]
  $region57: #{tpu_custom_call.1} parent=0
    _
  %s8 = ssub.s32 1, %s6
  %s9 = scalar_select 0, %s8, %s6
  $region1: #{tpu_custom_call.1} parent=0
    #allocation2 [shape = 'u8[131072]{0}', space=vmem, size = 0x20000, scoped, tag = 'input window, operand 3, single buffered']
    #allocation3 [shape = 's32[2]{0}', space=sflag, size = 0x8, scoped, tag = 'scoped memory for tpu_custom_call.1']
    #allocation4 [shape = 's32[2]{0}', space=sflag, size = 0x8, scoped, tag = 'scoped memory for tpu_custom_call.1']
    #allocation5 [shape = 'u8[32768]{0}', space=vmem, size = 0x8000, scoped, tag = 'output window, operand 0']
    %10 = vsyncpa [#allocation3], 0
    %11 = vsyncpa [#allocation4], 0
    %s12 = scalar_lea.sflag [#allocation4], 1
    %13 = vsyncpa %s12, 0
    loop: start=0, step=1, limit=4
    $region2: #{tpu_custom_call.1} parent=1 // loop_pre_header
      _
    $region3: #{tpu_custom_call.1} parent=1 // loop_header
      %s15 = sphi 0, %s19
      %p16 = scmp.ge.s32.totalorder %s15, 4
      %s25 = sphi 0, %s27
      %s28 = sphi 0, %s25
      %s29 = sphi 0, %s28
      %s45 = sphi 0, %s29
      %s49 = sphi 0, %s49
      %s51 = sphi 0, %s49
      %s52 = sphi 0, %s51
      %s66 = sphi 0, %s52
      %s70 = sphi 0, %s70
      %s72 = sphi 0, %s70
      %s73 = sphi 0, %s72
      %s87 = sphi 0, %s73
      %s91 = sphi 0, %s91
      %s93 = sphi 0, %s91
      %s94 = sphi 0, %s93
      %s108 = sphi 0, %s94
      %s112 = sphi 0, %s112
      %s114 = sphi 0, %s112
      %s115 = sphi 0, %s114
      %s129 = sphi 0, %s115
      %s135 = sphi 0, %s137
      %s138 = sphi 0, %s135
      %s139 = sphi 0, %s138
      %s155 = sphi 0, %s139
    $region4: #{tpu_custom_call.1} parent=1 // loop_header_branch
      %18 = sbr.rel (%p16) target = $region8
    $region5: #{tpu_custom_call.1} parent=1 // loop_body
      %s20 = ssub.s32 %s15, 1
      %s21 = ssub.s32 %s15, 2
      %s22 = sadd.s32 %s15, 1
      %s23 = ssub.s32 %s15, %s22
      %p24 = scmp.eq.s32.totalorder %s23, 0
      %s26 = sadd.s32 %s25, 1
      %s27 = scalar_select %p24, %s25, %s26
      %p30 = pneg %p24
      %p31 = scmp.eq.s32.totalorder %s15, 1
      %p32 = por %p30, %p31
      %p33 = scmp.ne.s32.totalorder %s25, %s28
      %p34 = scmp.eq.s32.totalorder %s15, 0
      %p35 = por %p33, %p34
      %p36 = scmp.ne.s32.totalorder %s25, %s28
      %p37 = scmp.eq.s32.totalorder %s20, 1
      %p38 = por %p36, %p37
      %p39 = scmp.ne.s32.totalorder %s28, %s29
      %p40 = scmp.eq.s32.totalorder %s20, 0
      %p41 = por %p39, %p40
      %p42 = scmp.ne.s32.totalorder %s28, %s29
      %p43 = scmp.eq.s32.totalorder %s21, 1
      %p44 = por %p42, %p43
      %p46 = scmp.ne.s32.totalorder %s29, %s45
      %p47 = scmp.eq.s32.totalorder %s21, 0
      %p48 = por %p46, %p47
      %s50 = sadd.s32 %s49, 1
      %p53 = scmp.eq.s32.totalorder %s15, 1
      %p54 = scmp.ne.s32.totalorder %s49, %s51
      %p55 = scmp.eq.s32.totalorder %s15, 0
      %p56 = por %p54, %p55
      %p57 = scmp.ne.s32.totalorder %s49, %s51
      %p58 = scmp.eq.s32.totalorder %s20, 1
      %p59 = por %p57, %p58
      %p60 = scmp.ne.s32.totalorder %s51, %s52
      %p61 = scmp.eq.s32.totalorder %s20, 0
      %p62 = por %p60, %p61
      %p63 = scmp.ne.s32.totalorder %s51, %s52
      %p64 = scmp.eq.s32.totalorder %s21, 1
      %p65 = por %p63, %p64
      %p67 = scmp.ne.s32.totalorder %s52, %s66
      %p68 = scmp.eq.s32.totalorder %s21, 0
      %p69 = por %p67, %p68
      %s71 = sadd.s32 %s70, 1
      %p74 = scmp.eq.s32.totalorder %s15, 1
      %p75 = scmp.ne.s32.totalorder %s70, %s72
      %p76 = scmp.eq.s32.totalorder %s15, 0
      %p77 = por %p75, %p76
      %p78 = scmp.ne.s32.totalorder %s70, %s72
      %p79 = scmp.eq.s32.totalorder %s20, 1
      %p80 = por %p78, %p79
      %p81 = scmp.ne.s32.totalorder %s72, %s73
      %p82 = scmp.eq.s32.totalorder %s20, 0
      %p83 = por %p81, %p82
      %p84 = scmp.ne.s32.totalorder %s72, %s73
      %p85 = scmp.eq.s32.totalorder %s21, 1
      %p86 = por %p84, %p85
      %p88 = scmp.ne.s32.totalorder %s73, %s87
      %p89 = scmp.eq.s32.totalorder %s21, 0
      %p90 = por %p88, %p89
      %s92 = sadd.s32 %s91, 1
      %p95 = scmp.eq.s32.totalorder %s15, 1
      %p96 = scmp.ne.s32.totalorder %s91, %s93
      %p97 = scmp.eq.s32.totalorder %s15, 0
      %p98 = por %p96, %p97
      %p99 = scmp.ne.s32.totalorder %s91, %s93
      %p100 = scmp.eq.s32.totalorder %s20, 1
      %p101 = por %p99, %p100
      %p102 = scmp.ne.s32.totalorder %s93, %s94
      %p103 = scmp.eq.s32.totalorder %s20, 0
      %p104 = por %p102, %p103
      %p105 = scmp.ne.s32.totalorder %s93, %s94
      %p106 = scmp.eq.s32.totalorder %s21, 1
      %p107 = por %p105, %p106
      %p109 = scmp.ne.s32.totalorder %s94, %s108
      %p110 = scmp.eq.s32.totalorder %s21, 0
      %p111 = por %p109, %p110
      %s113 = sadd.s32 %s112, 1
      %p116 = scmp.eq.s32.totalorder %s15, 1
      %p117 = scmp.ne.s32.totalorder %s112, %s114
      %p118 = scmp.eq.s32.totalorder %s15, 0
      %p119 = por %p117, %p118
      %p120 = scmp.ne.s32.totalorder %s112, %s114
      %p121 = scmp.eq.s32.totalorder %s20, 1
      %p122 = por %p120, %p121
      %p123 = scmp.ne.s32.totalorder %s114, %s115
      %p124 = scmp.eq.s32.totalorder %s20, 0
      %p125 = por %p123, %p124
      %p126 = scmp.ne.s32.totalorder %s114, %s115
      %p127 = scmp.eq.s32.totalorder %s21, 1
      %p128 = por %p126, %p127
      %p130 = scmp.ne.s32.totalorder %s115, %s129
      %p131 = scmp.eq.s32.totalorder %s21, 0
      %p132 = por %p130, %p131
      %s133 = ssub.s32 %s15, %s22
      %p134 = scmp.eq.s32.totalorder %s133, 0
      %s136 = sadd.s32 %s135, 1
      %s137 = scalar_select %p134, %s135, %s136
      %p140 = pneg %p134
      %p141 = scmp.eq.s32.totalorder %s15, 1
      %p142 = por %p140, %p141
      %p143 = scmp.ne.s32.totalorder %s135, %s138
      %p144 = scmp.eq.s32.totalorder %s15, 0
      %p145 = por %p143, %p144
      %p146 = scmp.ne.s32.totalorder %s135, %s138
      %p147 = scmp.eq.s32.totalorder %s20, 1
      %p148 = por %p146, %p147
      %p149 = scmp.ne.s32.totalorder %s138, %s139
      %p150 = scmp.eq.s32.totalorder %s20, 0
      %p151 = por %p149, %p150
      %p152 = scmp.ne.s32.totalorder %s138, %s139
      %p153 = scmp.eq.s32.totalorder %s21, 1
      %p154 = por %p152, %p153
      %p156 = scmp.ne.s32.totalorder %s139, %s155
      %p157 = scmp.eq.s32.totalorder %s21, 0
      %p158 = por %p156, %p157
      %p159 = scmp.le.s32.totalorder 1, %s15
      %p160 = scmp.lt.s32.totalorder %s15, 3
      %p161 = pnand %p159, %p160
      %p162 = pneg %p161
      // Predicated region
      $region9: #{tpu_custom_call.1} parent=5 // pred_check
        _
      $region10: #{tpu_custom_call.1} parent=5 // pred_check_branch
        %164 = sbr.rel (%p161) target = $region12
      $region11: #{tpu_custom_call.1} parent=5 // pred_region
        %s165 = ssub.s32 %s15, 1
        // Predicated region
        $region13: #{tpu_custom_call.1} parent=11 // pred_check
          %p166 = pneg %p62
        $region14: #{tpu_custom_call.1} parent=11 // pred_check_branch
          %168 = sbr.rel (%p166) target = $region16
        $region15: #{tpu_custom_call.1} parent=11 // pred_region
          _
        $region16: #{tpu_custom_call.1} parent=11 // pred_fallthru
          _
        // Predicated region
        $region17: #{tpu_custom_call.1} parent=11 // pred_check
          %p169 = pneg %p83
        $region18: #{tpu_custom_call.1} parent=11 // pred_check_branch
          %171 = sbr.rel (%p169) target = $region20
        $region19: #{tpu_custom_call.1} parent=11 // pred_region
          _
        $region20: #{tpu_custom_call.1} parent=11 // pred_fallthru
          _
        // Predicated region
        $region21: #{tpu_custom_call.1} parent=11 // pred_check
          %p172 = pneg %p104
        $region22: #{tpu_custom_call.1} parent=11 // pred_check_branch
          %174 = sbr.rel (%p172) target = $region24
        $region23: #{tpu_custom_call.1} parent=11 // pred_region
          %s176 = ssub.s32 4096, 4096
          %177 = vsyncadd [#allocation3], %s176
          %s178 = sshll.u32 [#allocation2], 4
          %s179 = int_to_ptr.vmem [resolvable:$true] %s178
          %184 = dma.hbm_to_vmem [thread:$0]  %s3, 4096, %s179, [#allocation3], 256, 256, 16
        $region24: #{tpu_custom_call.1} parent=11 // pred_fallthru
          _
        // Predicated region
        $region25: #{tpu_custom_call.1} parent=11 // pred_check
          %p185 = pneg %p125
        $region26: #{tpu_custom_call.1} parent=11 // pred_check_branch
          %187 = sbr.rel (%p185) target = $region28
        $region27: #{tpu_custom_call.1} parent=11 // pred_region
          _
        $region28: #{tpu_custom_call.1} parent=11 // pred_fallthru
          _
      $region12: #{tpu_custom_call.1} parent=5 // pred_fallthru
        _
      %p188 = scmp.lt.s32.totalorder %s15, 2
      // Predicated region
      $region29: #{tpu_custom_call.1} parent=5 // pred_check
        %p189 = pneg %p188
      $region30: #{tpu_custom_call.1} parent=5 // pred_check_branch
        %191 = sbr.rel (%p189) target = $region32
      $region31: #{tpu_custom_call.1} parent=5 // pred_region
        // Predicated region
        $region33: #{tpu_custom_call.1} parent=31 // pred_check
          %p192 = pneg %p35
        $region34: #{tpu_custom_call.1} parent=31 // pred_check_branch
          %194 = sbr.rel (%p192) target = $region36
        $region35: #{tpu_custom_call.1} parent=31 // pred_region
          %p195 = scmp.lt.s32.totalorder %s15, 1
          %s196 = scalar_select %p195, %s15, 1
          %s197 = smul.addr %s196, 6
          %s198 = smul.addr %s197, 8
          %s199 = scalar_lea.vmem %s0, %s198
        $region36: #{tpu_custom_call.1} parent=31 // pred_fallthru
          _
      $region32: #{tpu_custom_call.1} parent=5 // pred_fallthru
        _
      %p200 = scmp.le.s32.totalorder 1, %s15
      %p201 = scmp.lt.s32.totalorder %s15, 3
      %p202 = pnand %p200, %p201
      %p203 = pneg %p202
      // Predicated region
      $region37: #{tpu_custom_call.1} parent=5 // pred_check
        _
      $region38: #{tpu_custom_call.1} parent=5 // pred_check_branch
        %205 = sbr.rel (%p202) target = $region40
      $region39: #{tpu_custom_call.1} parent=5 // pred_region
        %s206 = ssub.s32 %s15, 1
        // Predicated region
        $region41: #{tpu_custom_call.1} parent=39 // pred_check
          %p207 = pneg %p104
        $region42: #{tpu_custom_call.1} parent=39 // pred_check_branch
          %209 = sbr.rel (%p207) target = $region44
        $region43: #{tpu_custom_call.1} parent=39 // pred_region
          %210 = dma.done [#allocation3], 4096
        $region44: #{tpu_custom_call.1} parent=39 // pred_fallthru
          _
        %p211 = scmp.lt.s32.totalorder %s20, 1
        %s212 = scalar_select %p211, %s20, 1
        %s213 = smul.addr %s212, 6
        %s214 = smul.addr %s213, 8
        %s215 = scalar_lea.vmem %s0, %s214
        %p216 = pneg %p41
        %p217 = pneg %p38
        %p218 = pneg %p62
        %p219 = pneg %p59
        %p220 = pneg %p83
        %p221 = pneg %p80
        %p222 = pneg %p104
        %p223 = pneg %p101
        %p224 = pneg %p125
        %p225 = pneg %p122
        %p226 = pneg %p151
        %p227 = pneg %p148
        %s228 = sand.u32 %s138, 1
        %s229 = scalar_lea.sflag [#allocation4], %s228
        %s230 = sand.u32 %s138, 1
        %s231 = smul.addr %s230, 32
        %s232 = scalar_lea.vmem [#allocation5], %s231
        %p233 = scmp.lt.s32.totalorder %s20, 1
        %s234 = scalar_select %p233, %s20, 1
        %s235 = smul.addr %s234, 6
        %s236 = smul.addr %s235, 8
        %s237 = scalar_lea.vmem %s0, %s236
        %v238 = vld [vmem:[%s237] sm:$0xff]
        %v239 = vld [vmem:[%s237 + $0x8] sm:$0xff]
        %v240 = vld [vmem:[%s237 + $0x10] sm:$0xff]
        %v241 = vld [vmem:[%s237 + $0x18] sm:$0xff]
        %v242 = vld [vmem:[%s237 + $0x20] sm:$0x3]
        %v243 = vld [vmem:[%s237 + $0x28] sm:$0x3]
        %v244 = vld [vmem:[%s1] sm:$0xff]
        %v245 = vld [vmem:[%s1 + $0x8] sm:$0x1]
        %v246 = vld [vmem:[%s2] sm:$0x1]
        %v248 = vlaneseq
        %v249 = vshrl.u32 %v248, 7
        %v250 = vsub.s32 0, %v249
        %v251 = vrot.slane %v246, %v250
        %v253 = vlaneseq
        %v254 = vshrl.u32 %v253, 7
        %v255 = vsub.s32 0, %v254
        %v256 = vrot.slane %v244, %v255
        %v257 = vmul.f32 %v238, %v256
        %v258 = vmul.f32 %v240, %v256
        %v259 = vadd.f32 %v251, %v257
        %v260 = vadd.f32 %v251, %v258
        %v261 = vlaneseq
        %v262 = vshrl.u32 %v261, 7
        %v263 = vsub.s32 1, %v262
        %v264 = vrot.slane %v244, %v263
        %266 = vrot.lane.b32.xlu0 %v264, 8
        %v267 = vpop.permute.xlu0 %266
        %v269 = vmul.f32 %v238, %v267
        %v270 = vmul.f32 %v239, %v267
        %v271 = vmul.f32 %v240, %v267
        %v272 = vmul.f32 %v241, %v267
        %277 = vrot.lane.b32.xlu0 %v269, 120
        %v278 = vpop.permute.xlu0 %277
        %279 = vrot.lane.b32.xlu0 %v270, 120
        %v280 = vpop.permute.xlu0 %279
        %281 = vrot.lane.b32.xlu0 %v271, 120
        %v282 = vpop.permute.xlu0 %281
        %283 = vrot.lane.b32.xlu0 %v272, 120
        %v284 = vpop.permute.xlu0 %283
        %vm285 = vcmask 982016
        %v286 = vsel %vm285, %v278, %v280
        %v287 = vsel %vm285, %v282, %v284
        %v290 = vadd.f32 %v259, %v286
        %v291 = vadd.f32 %v260, %v287
        %v292 = vlaneseq
        %v293 = vshrl.u32 %v292, 7
        %v294 = vsub.s32 2, %v293
        %v295 = vrot.slane %v244, %v294
        %297 = vrot.lane.b32.xlu0 %v295, 16
        %v298 = vpop.permute.xlu0 %297
        %v300 = vmul.f32 %v238, %v298
        %v301 = vmul.f32 %v239, %v298
        %v302 = vmul.f32 %v240, %v298
        %v303 = vmul.f32 %v241, %v298
        %308 = vrot.lane.b32.xlu0 %v300, 112
        %v309 = vpop.permute.xlu0 %308
        %310 = vrot.lane.b32.xlu0 %v301, 112
        %v311 = vpop.permute.xlu0 %310
        %312 = vrot.lane.b32.xlu0 %v302, 112
        %v313 = vpop.permute.xlu0 %312
        %314 = vrot.lane.b32.xlu0 %v303, 112
        %v315 = vpop.permute.xlu0 %314
        %vm316 = vcmask 916480
        %v317 = vsel %vm316, %v309, %v311
        %v318 = vsel %vm316, %v313, %v315
        %v321 = vadd.f32 %v290, %v317
        %v322 = vadd.f32 %v291, %v318
        %v323 = vlaneseq
        %v324 = vshrl.u32 %v323, 7
        %v325 = vsub.s32 3, %v324
        %v326 = vrot.slane %v244, %v325
        %v327 = vmul.f32 %v238, %v326
        %v328 = vmul.f32 %v240, %v326
        %v329 = vmul.f32 %v242, %v326
        %vm333 = vcmask 1046528
        %v334 = vrot.slane %v327, 1
        %v335 = vrot.slane %v328, 1
        %v336 = vsel %vm333, %v334, %v335
        %v337 = vrot.slane %v329, 1
        %v338 = vsel %vm333, %v335, %v337
        %v341 = vadd.f32 %v321, %v336
        %v342 = vadd.f32 %v322, %v338
        %v343 = vlaneseq
        %v344 = vshrl.u32 %v343, 7
        %v345 = vsub.s32 4, %v344
        %v346 = vrot.slane %v244, %v345
        %348 = vrot.lane.b32.xlu0 %v346, 8
        %v349 = vpop.permute.xlu0 %348
        %v351 = vmul.f32 %v238, %v349
        %v352 = vmul.f32 %v239, %v349
        %v353 = vmul.f32 %v240, %v349
        %v354 = vmul.f32 %v241, %v349
        %v355 = vmul.f32 %v242, %v349
        %v356 = vmul.f32 %v243, %v349
        %v363 = vrot.slane %v351, 1
        %v364 = vrot.slane %v353, 1
        %v365 = vsel %vm333, %v363, %v364
        %v366 = vrot.slane %v352, 1
        %v367 = vrot.slane %v354, 1
        %v368 = vsel %vm333, %v366, %v367
        %v369 = vrot.slane %v355, 1
        %v370 = vsel %vm333, %v364, %v369
        %v371 = vrot.slane %v356, 1
        %v372 = vsel %vm333, %v367, %v371
        %373 = vrot.lane.b32.xlu0 %v365, 120
        %v374 = vpop.permute.xlu0 %373
        %375 = vrot.lane.b32.xlu0 %v368, 120
        %v376 = vpop.permute.xlu0 %375
        %377 = vrot.lane.b32.xlu0 %v370, 120
        %v378 = vpop.permute.xlu0 %377
        %379 = vrot.lane.b32.xlu0 %v372, 120
        %v380 = vpop.permute.xlu0 %379
        %v381 = vsel %vm285, %v374, %v376
        %v382 = vsel %vm285, %v378, %v380
        %v385 = vadd.f32 %v341, %v381
        %v386 = vadd.f32 %v342, %v382
        %v387 = vlaneseq
        %v388 = vshrl.u32 %v387, 7
        %v389 = vsub.s32 5, %v388
        %v390 = vrot.slane %v244, %v389
        %392 = vrot.lane.b32.xlu0 %v390, 16
        %v393 = vpop.permute.xlu0 %392
        %v395 = vmul.f32 %v238, %v393
        %v396 = vmul.f32 %v239, %v393
        %v397 = vmul.f32 %v240, %v393
        %v398 = vmul.f32 %v241, %v393
        %v399 = vmul.f32 %v242, %v393
        %v400 = vmul.f32 %v243, %v393
        %v407 = vrot.slane %v395, 1
        %v408 = vrot.slane %v397, 1
        %v409 = vsel %vm333, %v407, %v408
        %v410 = vrot.slane %v396, 1
        %v411 = vrot.slane %v398, 1
        %v412 = vsel %vm333, %v410, %v411
        %v413 = vrot.slane %v399, 1
        %v414 = vsel %vm333, %v408, %v413
        %v415 = vrot.slane %v400, 1
        %v416 = vsel %vm333, %v411, %v415
        %417 = vrot.lane.b32.xlu0 %v409, 112
        %v418 = vpop.permute.xlu0 %417
        %419 = vrot.lane.b32.xlu0 %v412, 112
        %v420 = vpop.permute.xlu0 %419
        %421 = vrot.lane.b32.xlu0 %v414, 112
        %v422 = vpop.permute.xlu0 %421
        %423 = vrot.lane.b32.xlu0 %v416, 112
        %v424 = vpop.permute.xlu0 %423
        %v425 = vsel %vm316, %v418, %v420
        %v426 = vsel %vm316, %v422, %v424
        %v429 = vadd.f32 %v385, %v425
        %v430 = vadd.f32 %v386, %v426
        %v431 = vlaneseq
        %v432 = vshrl.u32 %v431, 7
        %v433 = vsub.s32 6, %v432
        %v434 = vrot.slane %v244, %v433
        %v435 = vmul.f32 %v238, %v434
        %v436 = vmul.f32 %v240, %v434
        %v437 = vmul.f32 %v242, %v434
        %vm441 = vcmask 1045504
        %v442 = vrot.slane %v435, 2
        %v443 = vrot.slane %v436, 2
        %v444 = vsel %vm441, %v442, %v443
        %v445 = vrot.slane %v437, 2
        %v446 = vsel %vm441, %v443, %v445
        %v449 = vadd.f32 %v429, %v444
        %v450 = vadd.f32 %v430, %v446
        %v451 = vlaneseq
        %v452 = vshrl.u32 %v451, 7
        %v453 = vsub.s32 7, %v452
        %v454 = vrot.slane %v244, %v453
        %456 = vrot.lane.b32.xlu0 %v454, 8
        %v457 = vpop.permute.xlu0 %456
        %v459 = vmul.f32 %v238, %v457
        %v460 = vmul.f32 %v239, %v457
        %v461 = vmul.f32 %v240, %v457
        %v462 = vmul.f32 %v241, %v457
        %v463 = vmul.f32 %v242, %v457
        %v464 = vmul.f32 %v243, %v457
        %v471 = vrot.slane %v459, 2
        %v472 = vrot.slane %v461, 2
        %v473 = vsel %vm441, %v471, %v472
        %v474 = vrot.slane %v460, 2
        %v475 = vrot.slane %v462, 2
        %v476 = vsel %vm441, %v474, %v475
        %v477 = vrot.slane %v463, 2
        %v478 = vsel %vm441, %v472, %v477
        %v479 = vrot.slane %v464, 2
        %v480 = vsel %vm441, %v475, %v479
        %481 = vrot.lane.b32.xlu0 %v473, 120
        %v482 = vpop.permute.xlu0 %481
        %483 = vrot.lane.b32.xlu0 %v476, 120
        %v484 = vpop.permute.xlu0 %483
        %485 = vrot.lane.b32.xlu0 %v478, 120
        %v486 = vpop.permute.xlu0 %485
        %487 = vrot.lane.b32.xlu0 %v480, 120
        %v488 = vpop.permute.xlu0 %487
        %v489 = vsel %vm285, %v482, %v484
        %v490 = vsel %vm285, %v486, %v488
        %v493 = vadd.f32 %v449, %v489
        %v494 = vadd.f32 %v450, %v490
        %v495 = vlaneseq
        %v496 = vshrl.u32 %v495, 7
        %v497 = vsub.s32 0, %v496
        %v498 = vrot.slane %v245, %v497
        %500 = vrot.lane.b32.xlu0 %v498, 16
        %v501 = vpop.permute.xlu0 %500
        %v503 = vmul.f32 %v238, %v501
        %v504 = vmul.f32 %v239, %v501
        %v505 = vmul.f32 %v240, %v501
        %v506 = vmul.f32 %v241, %v501
        %v507 = vmul.f32 %v242, %v501
        %v508 = vmul.f32 %v243, %v501
        %v515 = vrot.slane %v503, 2
        %v516 = vrot.slane %v505, 2
        %v517 = vsel %vm441, %v515, %v516
        %v518 = vrot.slane %v504, 2
        %v519 = vrot.slane %v506, 2
        %v520 = vsel %vm441, %v518, %v519
        %v521 = vrot.slane %v507, 2
        %v522 = vsel %vm441, %v516, %v521
        %v523 = vrot.slane %v508, 2
        %v524 = vsel %vm441, %v519, %v523
        %525 = vrot.lane.b32.xlu0 %v517, 112
        %v526 = vpop.permute.xlu0 %525
        %527 = vrot.lane.b32.xlu0 %v520, 112
        %v528 = vpop.permute.xlu0 %527
        %529 = vrot.lane.b32.xlu0 %v522, 112
        %v530 = vpop.permute.xlu0 %529
        %531 = vrot.lane.b32.xlu0 %v524, 112
        %v532 = vpop.permute.xlu0 %531
        %v533 = vsel %vm316, %v526, %v528
        %v534 = vsel %vm316, %v530, %v532
        %v537 = vadd.f32 %v493, %v533
        %v538 = vadd.f32 %v494, %v534
        %v539 = vxor.u32 %v537, 2147483648
        %v540 = vxor.u32 %v538, 2147483648
        %v541 = vmul.f32 %v539, 1.442695
        %v542 = vpow.pop %v541
        %v543 = vmul.f32 %v540, 1.442695
        %v544 = vpow.pop %v543
        %v545 = vadd.f32 %v542, 1.0
        %v546 = vadd.f32 %v544, 1.0
        %v547 = vrcp.pop %v545
        %v548 = vmul.f32 1.0, %v547
        %v549 = vrcp.pop %v546
        %v550 = vmul.f32 1.0, %v549
        %v551 = vmul.f32 %v537, %v548
        %v552 = vmul.f32 %v538, %v550
        %v553 = vld [vmem:[#allocation2] sm:$0xff]
        %v554 = vld [vmem:[#allocation2 + $0x8] sm:$0xff]
        %v555 = vld [vmem:[#allocation2 + $0x10] sm:$0xff]
        %v556 = vld [vmem:[#allocation2 + $0x18] sm:$0xff]
        %v557 = vld [vmem:[#allocation2 + $0x20] sm:$0xff]
        %v558 = vld [vmem:[#allocation2 + $0x28] sm:$0xff]
        %v559 = vld [vmem:[#allocation2 + $0x30] sm:$0xff]
        %v560 = vld [vmem:[#allocation2 + $0x38] sm:$0xff]
        %v561 = vld [vmem:[#allocation2 + $0x40] sm:$0xff]
        %v562 = vld [vmem:[#allocation2 + $0x48] sm:$0xff]
        %v563 = vld [vmem:[#allocation2 + $0x50] sm:$0xff]
        %v564 = vld [vmem:[#allocation2 + $0x58] sm:$0xff]
        %v565 = vld [vmem:[#allocation2 + $0x60] sm:$0xff]
        %v566 = vld [vmem:[#allocation2 + $0x68] sm:$0xff]
        %v567 = vld [vmem:[#allocation2 + $0x70] sm:$0xff]
        %v568 = vld [vmem:[#allocation2 + $0x78] sm:$0xff]
        %v569 = vld [vmem:[#allocation2 + $0x80] sm:$0xff]
        %v570 = vld [vmem:[#allocation2 + $0x88] sm:$0xff]
        %v571 = vld [vmem:[#allocation2 + $0x90] sm:$0xff]
        %v572 = vld [vmem:[#allocation2 + $0x98] sm:$0xff]
        %v573 = vld [vmem:[#allocation2 + $0xa0] sm:$0xff]
        %v574 = vld [vmem:[#allocation2 + $0xa8] sm:$0xff]
        %v575 = vld [vmem:[#allocation2 + $0xb0] sm:$0xff]
        %v576 = vld [vmem:[#allocation2 + $0xb8] sm:$0xff]
        %v577 = vld [vmem:[#allocation2 + $0xc0] sm:$0xff]
        %v578 = vld [vmem:[#allocation2 + $0xc8] sm:$0xff]
        %v579 = vld [vmem:[#allocation2 + $0xd0] sm:$0xff]
        %v580 = vld [vmem:[#allocation2 + $0xd8] sm:$0xff]
        %v581 = vld [vmem:[#allocation2 + $0xe0] sm:$0xff]
        %v582 = vld [vmem:[#allocation2 + $0xe8] sm:$0xff]
        %v583 = vld [vmem:[#allocation2 + $0xf0] sm:$0xff]
        %v584 = vld [vmem:[#allocation2 + $0xf8] sm:$0xff]
        %v585 = vld [vmem:[%s4] sm:$0x3]
        %v587 = vlaneseq
        %v588 = vshrl.u32 %v587, 7
        %v589 = vsub.s32 0, %v588
        %v590 = vrot.slane %v585, %v589
        %v591 = vlaneseq
        %v592 = vshrl.u32 %v591, 7
        %v593 = vsub.s32 1, %v592
        %v594 = vrot.slane %v585, %v593
        %597 = vmatprep.subr.mxu0 %v584
        %598 = vmatpush1.msra.mxu0 %v583
        %599 = vmatprep.subr.mxu0 %v582
        %600 = vmatpush1.msra.mxu0 %v581
        %601 = vmatprep.subr.mxu0 %v580
        %602 = vmatpush1.msra.mxu0 %v579
        %603 = vmatprep.subr.mxu0 %v578
        %604 = vmatpush1.msra.mxu0 %v577
        %605 = vmatprep.subr.mxu0 %v576
        %606 = vmatpush1.msra.mxu0 %v575
        %607 = vmatprep.subr.mxu0 %v574
        %608 = vmatpush1.msra.mxu0 %v573
        %609 = vmatprep.subr.mxu0 %v572
        %610 = vmatpush1.msra.mxu0 %v571
        %611 = vmatprep.subr.mxu0 %v570
        %612 = vmatpush1.msra.mxu0 %v569
        %613 = vmatprep.subr.mxu0 %v568
        %614 = vmatpush1.msra.mxu0 %v567
        %615 = vmatprep.subr.mxu0 %v566
        %616 = vmatpush1.msra.mxu0 %v565
        %617 = vmatprep.subr.mxu0 %v564
        %618 = vmatpush1.msra.mxu0 %v563
        %619 = vmatprep.subr.mxu0 %v562
        %620 = vmatpush1.msra.mxu0 %v561
        %621 = vmatprep.subr.mxu0 %v560
        %622 = vmatpush1.msra.mxu0 %v559
        %623 = vmatprep.subr.mxu0 %v558
        %624 = vmatpush1.msra.mxu0 %v557
        %625 = vmatprep.subr.mxu0 %v556
        %626 = vmatpush1.msra.mxu0 %v555
        %627 = vmatprep.subr.mxu0 %v554
        %628 = vmatpush1.msra.mxu0 %v553
        %629 = vmatprep.subr.mxu0 0.0
        %630 = vmatpush2.msra.mxu0 0.0
        %631 = vmatprep.subr.mxu0 0.0
        %632 = vmatpush2.msra.mxu0 0.0
        %633 = vmatprep.subr.mxu0 0.0
        %634 = vmatpush2.msra.mxu0 0.0
        %635 = vmatprep.subr.mxu0 0.0
        %636 = vmatpush2.msra.mxu0 0.0
        %637 = vmatprep.subr.mxu0 0.0
        %638 = vmatpush2.msra.mxu0 0.0
        %639 = vmatprep.subr.mxu0 0.0
        %640 = vmatpush2.msra.mxu0 0.0
        %641 = vmatprep.subr.mxu0 0.0
        %642 = vmatpush2.msra.mxu0 0.0
        %643 = vmatprep.subr.mxu0 0.0
        %644 = vmatpush2.msra.mxu0 0.0
        %645 = vmatprep.subr.mxu0 0.0
        %646 = vmatpush2.msra.mxu0 0.0
        %647 = vmatprep.subr.mxu0 0.0
        %648 = vmatpush2.msra.mxu0 0.0
        %649 = vmatprep.subr.mxu0 0.0
        %650 = vmatpush2.msra.mxu0 0.0
        %651 = vmatprep.subr.mxu0 0.0
        %652 = vmatpush2.msra.mxu0 0.0
        %653 = vmatprep.subr.mxu0 0.0
        %654 = vmatpush2.msra.mxu0 0.0
        %655 = vmatprep.subr.mxu0 0.0
        %656 = vmatpush2.msra.mxu0 0.0
        %657 = vmatprep.subr.mxu0 0.0
        %658 = vmatpush2.msra.mxu0 0.0
        %659 = vmatprep.subr.mxu0 0.0
        %660 = vmatpush2.msra.mxu0 0.0
        %661 = vmatprep.mubr.f32.mxu0 0.0
        %662 = vmatmul.mubr.f32.gmra.mxu0 %v551
        %v663 = vpop.f32.mrf.mxu0
        %v664 = vadd.f32 %v590, %v663
        %v665 = vpop.f32.mrf.mxu0
        %v666 = vadd.f32 %v594, %v665
        %667 = vmatprep.mubr.f32.mxu0 0.0
        %668 = vmatmul.mubr.f32.gmra.mxu0 %v552
        %v669 = vpop.f32.mrf.mxu0
        %v670 = vadd.f32 %v590, %v669
        %v671 = vpop.f32.mrf.mxu0
        %v672 = vadd.f32 %v594, %v671
        %673 = vdwg.mxu0
        %v674 = vxor.u32 %v664, 2147483648
        %v675 = vxor.u32 %v666, 2147483648
        %v676 = vxor.u32 %v670, 2147483648
        %v677 = vxor.u32 %v672, 2147483648
        %v678 = vmul.f32 %v674, 1.442695
        %v679 = vpow.pop %v678
        %v680 = vmul.f32 %v675, 1.442695
        %v681 = vpow.pop %v680
        %v682 = vmul.f32 %v676, 1.442695
        %v683 = vpow.pop %v682
        %v684 = vmul.f32 %v677, 1.442695
        %v685 = vpow.pop %v684
        %v686 = vadd.f32 %v679, 1.0
        %v687 = vadd.f32 %v681, 1.0
        %v688 = vadd.f32 %v683, 1.0
        %v689 = vadd.f32 %v685, 1.0
        %v690 = vrcp.pop %v686
        %v691 = vmul.f32 1.0, %v690
        %v692 = vrcp.pop %v687
        %v693 = vmul.f32 1.0, %v692
        %v694 = vrcp.pop %v688
        %v695 = vmul.f32 1.0, %v694
        %v696 = vrcp.pop %v689
        %v697 = vmul.f32 1.0, %v696
        %v698 = vmul.f32 %v664, %v691
        %v699 = vmul.f32 %v666, %v693
        %v700 = vmul.f32 %v670, %v695
        %v701 = vmul.f32 %v672, %v697
        %702 = vst [vmem:[%s232] sm:$0xff] %v698
        %703 = vst [vmem:[%s232 + $0x8] sm:$0xff] %v699
        %704 = vst [vmem:[%s232 + $0x10] sm:$0xff] %v700
        %705 = vst [vmem:[%s232 + $0x18] sm:$0xff] %v701
        %s706 = sand.u32 %s138, 1
        %s707 = scalar_lea.sflag [#allocation4], %s706
        %s708 = sand.u32 %s138, 1
        %s709 = smul.addr %s708, 32
        %s710 = scalar_lea.vmem [#allocation5], %s709
        // Predicated region
        $region45: #{tpu_custom_call.1} parent=39 // pred_check
          %p711 = pneg %p148
        $region46: #{tpu_custom_call.1} parent=39 // pred_check_branch
          %713 = sbr.rel (%p711) target = $region48
        $region47: #{tpu_custom_call.1} parent=39 // pred_region
          %s715 = ssub.s32 512, 512
          %716 = vsyncadd %s707, %s715
          %s717 = smul.addr %s20, 4
          %s718 = smul.addr %s717, 128
          %s719 = scalar_lea.hbm %s5, %s718
          %s720 = sshll.u32 %s710, 4
          %s721 = int_to_ptr.vmem [resolvable:$true] %s720
          %726 = dma.vmem_to_hbm [thread:$0]  %s721, 512, %s719, %s707, 256, 256, 16
        $region48: #{tpu_custom_call.1} parent=39 // pred_fallthru
          _
      $region40: #{tpu_custom_call.1} parent=5 // pred_fallthru
        _
      %p727 = scmp.le.s32.totalorder 2, %s15
      // Predicated region
      $region49: #{tpu_custom_call.1} parent=5 // pred_check
        %p728 = pneg %p727
      $region50: #{tpu_custom_call.1} parent=5 // pred_check_branch
        %730 = sbr.rel (%p728) target = $region52
      $region51: #{tpu_custom_call.1} parent=5 // pred_region
        %s731 = ssub.s32 %s15, 2
        // Predicated region
        $region53: #{tpu_custom_call.1} parent=51 // pred_check
          %p732 = pneg %p154
        $region54: #{tpu_custom_call.1} parent=51 // pred_check_branch
          %734 = sbr.rel (%p732) target = $region56
        $region55: #{tpu_custom_call.1} parent=51 // pred_region
          %s735 = sand.u32 %s139, 1
          %s736 = scalar_lea.sflag [#allocation4], %s735
          %s737 = sand.u32 %s139, 1
          %s738 = smul.addr %s737, 32
          %s739 = scalar_lea.vmem [#allocation5], %s738
          %740 = dma.done %s736, 512
        $region56: #{tpu_custom_call.1} parent=51 // pred_fallthru
          _
      $region52: #{tpu_custom_call.1} parent=5 // pred_fallthru
        _
    $region6: #{tpu_custom_call.1} parent=1 // loop_footer
      %s19 = sadd.s32 1, %s15
    $region7: #{tpu_custom_call.1} parent=1 // loop_footer_branch
      %14 = sbr.rel target = $region3
    $region8: #{tpu_custom_call.1} parent=1 // loop_exit
      _
    %741 = vsyncpa [#allocation3], 1
    %s742 = scalar_lea.sflag [#allocation3], 1
    %743 = vsyncpa %s742, 1
    %744 = vsyncpa [#allocation4], 1
    %s745 = scalar_lea.sflag [#allocation4], 1
    %746 = vsyncpa %s745, 1

</llo_original>
